<compile_context>
chip_gen: v5e
topology: v5e:2x2
jax: 0.10.0
libtpu: 0.0.40
codegen_flags: <defaults>
</compile_context>

<pallas_src>
import jax
import jax.numpy as jnp
from jax.experimental import pallas as pl
from jax.experimental.pallas import tpu as pltpu


def _se_kernel(x_ref, w1t_ref, b1_ref, w2_ref, b2_ref, o_ref):
    # x_ref:   (1, C, HW)  one batch image, channels on sublanes, pixels on lanes
    # w1t_ref: (C, S)      conv1.weight transposed (1x1 conv, squeeze)
    # b1_ref:  (1, S)
    # w2_ref:  (C, S)      conv2.weight (1x1 conv, excite), native layout
    # b2_ref:  (C, 1)
    xb = x_ref[0].astype(jnp.float32)                         # (C, HW)

    # Global average pool over spatial (lane reduce).
    pooled = jnp.mean(xb, axis=-1, keepdims=True)             # (C, 1)

    # conv1 (1x1) + ReLU6, as broadcast-multiply + sublane reduce (no MXU).
    h = jnp.sum(w1t_ref[...] * pooled, axis=0, keepdims=True) + b1_ref[...]   # (1, S)
    h = jnp.clip(h, 0.0, 6.0)

    # conv2 (1x1) + Hardsigmoid, as broadcast-multiply + lane reduce.
    z = jnp.sum(w2_ref[...] * h, axis=1, keepdims=True) + b2_ref[...]         # (C, 1)
    wvec = jnp.clip(z + 3.0, 0.0, 6.0) * (1.0 / 6.0)          # hardsigmoid

    # Per-channel rescale, broadcast over lanes; lane-dense store.
    o_ref[0] = (xb * wvec).astype(o_ref.dtype)


def se_block_forward(x_nchw, conv1_w, conv1_b, conv2_w, conv2_b):
    """x_nchw: (N, C, H, W); conv1_w: (S, C, 1, 1); conv2_w: (C, S, 1, 1).
    Returns (N, C, H, W) with the same dtype as x, matching SEBlock.forward."""
    N, C, H, W = x_nchw.shape
    S = conv1_w.shape[0]
    HW = H * W

    # Free reshape: NCHW is already (N, C, H*W) contiguous.
    x3 = x_nchw.reshape(N, C, HW)

    # Tiny constant weight prep (outside the hot path).
    w1t = jnp.transpose(conv1_w.reshape(S, C)).astype(jnp.float32)   # (C, S)
    b1 = conv1_b.reshape(1, S).astype(jnp.float32)
    w2 = conv2_w.reshape(C, S).astype(jnp.float32)                   # (C, S)
    b2 = conv2_b.reshape(C, 1).astype(jnp.float32)

    itemsize = jnp.dtype(x_nchw.dtype).itemsize
    cost = pl.CostEstimate(
        flops=4 * N * C * HW + 4 * N * C * S,
        transcendentals=0,
        bytes_accessed=2 * N * C * HW * itemsize + 4 * (2 * C * S + S + C),
    )

    out3 = pl.pallas_call(
        _se_kernel,
        out_shape=jax.ShapeDtypeStruct((N, C, HW), x_nchw.dtype),
        grid_spec=pltpu.PrefetchScalarGridSpec(
            num_scalar_prefetch=0,
            grid=(N,),
            in_specs=[
                pl.BlockSpec((1, C, HW), lambda n: (n, 0, 0)),
                pl.BlockSpec((C, S), lambda n: (0, 0)),
                pl.BlockSpec((1, S), lambda n: (0, 0)),
                pl.BlockSpec((C, S), lambda n: (0, 0)),
                pl.BlockSpec((C, 1), lambda n: (0, 0)),
            ],
            out_specs=pl.BlockSpec((1, C, HW), lambda n: (n, 0, 0)),
        ),
        compiler_params=pltpu.CompilerParams(
            dimension_semantics=("parallel",)),
        cost_estimate=cost,
    )(x3, w1t, b1, w2, b2)

    return out3.reshape(N, C, H, W)


def _reference(x, conv1_w, conv1_b, conv2_w, conv2_b):
    # Pure-JAX reference of SEBlock.forward (ReLU6 activation, eval/training agnostic).
    N, C, H, W = x.shape
    S = conv1_w.shape[0]
    pooled = jnp.mean(x, axis=(2, 3))                                 # (N, C)
    h = jnp.clip(pooled @ conv1_w.reshape(S, C).T + conv1_b, 0.0, 6.0)  # (N, S)
    z = h @ conv2_w.reshape(C, S).T + conv2_b                         # (N, C)
    wv = jnp.clip(z + 3.0, 0.0, 6.0) / 6.0                            # hardsigmoid
    return x * wv[:, :, None, None]


if __name__ == "__main__":
    key = jax.random.PRNGKey(0)
    k_x, k_w1, k_w2 = jax.random.split(key, 3)

    N, C, H, W = 2, 4, 16, 16
    S = max(8, C // 4)  # squeezed channels, as in SEBlock.__init__

    x = jax.random.normal(k_x, (N, C, H, W), dtype=jnp.float32)

    # PyTorch-layout parameters for the two 1x1 convs.
    conv1_w = 0.3 * jax.random.normal(k_w1, (S, C, 1, 1), dtype=jnp.float32)
    conv1_b = 0.05 * jnp.arange(S, dtype=jnp.float32) - 0.1
    conv2_w = 0.3 * jax.random.normal(k_w2, (C, S, 1, 1), dtype=jnp.float32)
    conv2_b = 0.1 * jnp.arange(C, dtype=jnp.float32) - 0.2

    out = se_block_forward(x, conv1_w, conv1_b, conv2_w, conv2_b)
    out = jax.block_until_ready(out)

    ref = _reference(x, conv1_w, conv1_b, conv2_w, conv2_b)
    assert out.shape == (N, C, H, W), out.shape
    assert jnp.allclose(out, ref, atol=1e-4, rtol=1e-4), float(jnp.max(jnp.abs(out - ref)))

    print("KERNEL_OK")
</pallas_src>

<mosaic_0001>
module attributes {stable_mosaic.version = 11 : i64} {
  func.func @_se_kernel(%arg0: i32, %arg1: memref<1x4x256xf32, #tpu.memory_space<vmem>>, %arg2: memref<4x8xf32, #tpu.memory_space<vmem>>, %arg3: memref<1x8xf32, #tpu.memory_space<vmem>>, %arg4: memref<4x8xf32, #tpu.memory_space<vmem>>, %arg5: memref<4x1xf32, #tpu.memory_space<vmem>>, %arg6: memref<1x4x256xf32, #tpu.memory_space<vmem>>) attributes {dimension_semantics = [#tpu.dimension_semantics<parallel>], iteration_bounds = array<i64: 2>, scalar_prefetch = 0 : i64, scratch_operands = 0 : i64, tpu.core_type = #tpu.core_type<tc>, window_params = [{transform_indices = @transform_0, window_bounds = array<i64: 1, 4, 256>}, {pipeline_mode = #tpu.pipeline_mode<synchronous>, transform_indices = @transform_1, window_bounds = array<i64: 4, 8>}, {pipeline_mode = #tpu.pipeline_mode<synchronous>, transform_indices = @transform_2, window_bounds = array<i64: 1, 8>}, {pipeline_mode = #tpu.pipeline_mode<synchronous>, transform_indices = @transform_3, window_bounds = array<i64: 4, 8>}, {pipeline_mode = #tpu.pipeline_mode<synchronous>, transform_indices = @transform_4, window_bounds = array<i64: 4, 1>}, {transform_indices = @transform_5, window_bounds = array<i64: 1, 4, 256>}]} {
    %c0 = arith.constant 0 : index
    %c0_0 = arith.constant 0 : index
    %c0_1 = arith.constant 0 : index
    %0 = vector.load %arg1[%c0, %c0_0, %c0_1] : memref<1x4x256xf32, #tpu.memory_space<vmem>>, vector<1x4x256xf32>
    %1 = vector.shape_cast %0 : vector<1x4x256xf32> to vector<4x256xf32>
    %cst = arith.constant dense<0.000000e+00> : vector<4xf32>
    %2 = vector.multi_reduction <add>, %1, %cst [1] : vector<4x256xf32> to vector<4xf32>
    %3 = vector.shape_cast %2 : vector<4xf32> to vector<4x1xf32>
    %cst_2 = arith.constant 2.560000e+02 : f32
    %4 = vector.broadcast %cst_2 : f32 to vector<4x1xf32>
    %5 = arith.divf %3, %4 : vector<4x1xf32>
    %c0_3 = arith.constant 0 : index
    %c0_4 = arith.constant 0 : index
    %6 = vector.load %arg2[%c0_3, %c0_4] : memref<4x8xf32, #tpu.memory_space<vmem>>, vector<4x8xf32>
    %7 = vector.broadcast %5 : vector<4x1xf32> to vector<4x8xf32>
    %8 = arith.mulf %6, %7 : vector<4x8xf32>
    %cst_5 = arith.constant dense<0.000000e+00> : vector<8xf32>
    %9 = vector.multi_reduction <add>, %8, %cst_5 [0] : vector<4x8xf32> to vector<8xf32>
    %10 = vector.shape_cast %9 : vector<8xf32> to vector<1x8xf32>
    %c0_6 = arith.constant 0 : index
    %c0_7 = arith.constant 0 : index
    %11 = vector.load %arg3[%c0_6, %c0_7] : memref<1x8xf32, #tpu.memory_space<vmem>>, vector<1x8xf32>
    %12 = arith.addf %10, %11 : vector<1x8xf32>
    %cst_8 = arith.constant 0.000000e+00 : f32
    %cst_9 = arith.constant 6.000000e+00 : f32
    %13 = vector.broadcast %cst_8 : f32 to vector<1x8xf32>
    %14 = arith.maximumf %13, %12 : vector<1x8xf32>
    %15 = vector.broadcast %cst_9 : f32 to vector<1x8xf32>
    %16 = arith.minimumf %15, %14 : vector<1x8xf32>
    %c0_10 = arith.constant 0 : index
    %c0_11 = arith.constant 0 : index
    %17 = vector.load %arg4[%c0_10, %c0_11] : memref<4x8xf32, #tpu.memory_space<vmem>>, vector<4x8xf32>
    %18 = vector.broadcast %16 : vector<1x8xf32> to vector<4x8xf32>
    %19 = arith.mulf %17, %18 : vector<4x8xf32>
    %cst_12 = arith.constant dense<0.000000e+00> : vector<4xf32>
    %20 = vector.multi_reduction <add>, %19, %cst_12 [1] : vector<4x8xf32> to vector<4xf32>
    %21 = vector.shape_cast %20 : vector<4xf32> to vector<4x1xf32>
    %c0_13 = arith.constant 0 : index
    %c0_14 = arith.constant 0 : index
    %22 = vector.load %arg5[%c0_13, %c0_14] : memref<4x1xf32, #tpu.memory_space<vmem>>, vector<4x1xf32>
    %23 = arith.addf %21, %22 : vector<4x1xf32>
    %cst_15 = arith.constant 3.000000e+00 : f32
    %24 = vector.broadcast %cst_15 : f32 to vector<4x1xf32>
    %25 = arith.addf %23, %24 : vector<4x1xf32>
    %cst_16 = arith.constant 0.000000e+00 : f32
    %cst_17 = arith.constant 6.000000e+00 : f32
    %26 = vector.broadcast %cst_16 : f32 to vector<4x1xf32>
    %27 = arith.maximumf %26, %25 : vector<4x1xf32>
    %28 = vector.broadcast %cst_17 : f32 to vector<4x1xf32>
    %29 = arith.minimumf %28, %27 : vector<4x1xf32>
    %cst_18 = arith.constant 0.166666672 : f32
    %30 = vector.broadcast %cst_18 : f32 to vector<4x1xf32>
    %31 = arith.mulf %29, %30 : vector<4x1xf32>
    %32 = vector.broadcast %31 : vector<4x1xf32> to vector<4x256xf32>
    %33 = arith.mulf %1, %32 : vector<4x256xf32>
    %c0_19 = arith.constant 0 : index
    %c0_20 = arith.constant 0 : index
    %c0_21 = arith.constant 0 : index
    %34 = vector.load %arg6[%c0_19, %c0_20, %c0_21] : memref<1x4x256xf32, #tpu.memory_space<vmem>>, vector<1x4x256xf32>
    %35 = vector.shape_cast %34 : vector<1x4x256xf32> to vector<4x256xf32>
    %36 = vector.shape_cast %33 : vector<4x256xf32> to vector<1x4x256xf32>
    tpu.vector_store %arg6[%c0_19, %c0_20, %c0_21], %36 {strides = array<i32>} : memref<1x4x256xf32, #tpu.memory_space<vmem>>, vector<1x4x256xf32>,
    return
  }
  func.func @transform_0(%arg0: i32) -> (i32, i32, i32) {
    %c0_i32 = arith.constant 0 : i32
    %c0_i32_0 = arith.constant 0 : i32
    %c0_i32_1 = arith.constant 0 : i32
    return %arg0, %c0_i32, %c0_i32_0 : i32, i32, i32
  }
  func.func @transform_1(%arg0: i32) -> (i32, i32) {
    %c0_i32 = arith.constant 0 : i32
    %c0_i32_0 = arith.constant 0 : i32
    %c0_i32_1 = arith.constant 0 : i32
    return %c0_i32, %c0_i32_0 : i32, i32
  }
  func.func @transform_2(%arg0: i32) -> (i32, i32) {
    %c0_i32 = arith.constant 0 : i32
    %c0_i32_0 = arith.constant 0 : i32
    %c0_i32_1 = arith.constant 0 : i32
    return %c0_i32, %c0_i32_0 : i32, i32
  }
  func.func @transform_3(%arg0: i32) -> (i32, i32) {
    %c0_i32 = arith.constant 0 : i32
    %c0_i32_0 = arith.constant 0 : i32
    %c0_i32_1 = arith.constant 0 : i32
    return %c0_i32, %c0_i32_0 : i32, i32
  }
  func.func @transform_4(%arg0: i32) -> (i32, i32) {
    %c0_i32 = arith.constant 0 : i32
    %c0_i32_0 = arith.constant 0 : i32
    %c0_i32_1 = arith.constant 0 : i32
    return %c0_i32, %c0_i32_0 : i32, i32
  }
  func.func @transform_5(%arg0: i32) -> (i32, i32, i32) {
    %c0_i32 = arith.constant 0 : i32
    %c0_i32_0 = arith.constant 0 : i32
    %c0_i32_1 = arith.constant 0 : i32
    return %arg0, %c0_i32, %c0_i32_0 : i32, i32, i32
  }
}

</mosaic_0001>

<llo_original>
// kernel: tpu_custom_call.1
$region0: #{tpu_custom_call.1}
  #allocation0 [shape = 'u32[]', space=smem, size = 0x4, offset = 0x4, fixed_abs, tag = 'smem constant byte address 0x4 - core index']
  #allocation1 [shape = 'u32[72,128]{1,0:T(1,128)}', space=vmem, size = 0x9000, scoped, tag = 'internal scratch']
  %s0 = inlined_call_operand.hbm [shape: f32[2,4,256], index: 0, kind: input, shape index: {}]
  %s1 = inlined_call_operand.vmem [shape: f32[4,8], index: 1, kind: input, shape index: {}]
  %s2 = inlined_call_operand.vmem [shape: f32[1,8], index: 2, kind: input, shape index: {}]
  %s3 = inlined_call_operand.hbm [shape: f32[4,8], index: 3, kind: input, shape index: {}]
  %s4 = inlined_call_operand.vmem [shape: f32[4,1], index: 4, kind: input, shape index: {}]
  %s5 = inlined_call_operand.hbm [shape: f32[2,4,256], index: 5, kind: output, shape index: {}]
  %s6 = sld [smem:[#allocation0]]
  $region61: #{tpu_custom_call.1} parent=0
    _
  %s8 = ssub.s32 1, %s6
  %s9 = scalar_select 0, %s8, %s6
  $region1: #{tpu_custom_call.1} parent=0
    #allocation2 [shape = 'u8[8192]{0}', space=vmem, size = 0x2000, scoped, tag = 'input window, operand 0']
    #allocation3 [shape = 's32[2]{0}', space=sflag, size = 0x8, scoped, tag = 'scoped memory for tpu_custom_call.1']
    #allocation4 [shape = 's32[2]{0}', space=sflag, size = 0x8, scoped, tag = 'scoped memory for tpu_custom_call.1']
    #allocation5 [shape = 'u8[2048]{0}', space=vmem, size = 0x800, scoped, tag = 'input window, operand 3, single buffered']
    #allocation6 [shape = 's32[1]{0}', space=sflag, size = 0x4, scoped, tag = 'scoped memory for tpu_custom_call.1']
    #allocation7 [shape = 'u8[8192]{0}', space=vmem, size = 0x2000, scoped, tag = 'output window, operand 0']
    %10 = vsyncpa [#allocation3], 0
    %s11 = scalar_lea.sflag [#allocation3], 1
    %12 = vsyncpa %s11, 0
    %13 = vsyncpa [#allocation6], 0
    %14 = vsyncpa [#allocation4], 0
    %s15 = scalar_lea.sflag [#allocation4], 1
    %16 = vsyncpa %s15, 0
    loop: start=0, step=1, limit=4
    $region2: #{tpu_custom_call.1} parent=1 // loop_pre_header
      _
    $region3: #{tpu_custom_call.1} parent=1 // loop_header
      %s18 = sphi 0, %s22
      %p19 = scmp.ge.s32.totalorder %s18, 4
      %s28 = sphi 0, %s30
      %s31 = sphi 0, %s28
      %s32 = sphi 0, %s31
      %s48 = sphi 0, %s32
      %s52 = sphi 0, %s52
      %s54 = sphi 0, %s52
      %s55 = sphi 0, %s54
      %s69 = sphi 0, %s55
      %s73 = sphi 0, %s73
      %s75 = sphi 0, %s73
      %s76 = sphi 0, %s75
      %s90 = sphi 0, %s76
      %s94 = sphi 0, %s94
      %s96 = sphi 0, %s94
      %s97 = sphi 0, %s96
      %s111 = sphi 0, %s97
      %s115 = sphi 0, %s115
      %s117 = sphi 0, %s115
      %s118 = sphi 0, %s117
      %s132 = sphi 0, %s118
      %s138 = sphi 0, %s140
      %s141 = sphi 0, %s138
      %s142 = sphi 0, %s141
      %s158 = sphi 0, %s142
    $region4: #{tpu_custom_call.1} parent=1 // loop_header_branch
      %21 = sbr.rel (%p19) target = $region8
    $region5: #{tpu_custom_call.1} parent=1 // loop_body
      %s23 = ssub.s32 %s18, 1
      %s24 = ssub.s32 %s18, 2
      %s25 = sadd.s32 %s18, 1
      %s26 = ssub.s32 %s18, %s25
      %p27 = scmp.eq.s32.totalorder %s26, 0
      %s29 = sadd.s32 %s28, 1
      %s30 = scalar_select %p27, %s28, %s29
      %p33 = pneg %p27
      %p34 = scmp.eq.s32.totalorder %s18, 1
      %p35 = por %p33, %p34
      %p36 = scmp.ne.s32.totalorder %s28, %s31
      %p37 = scmp.eq.s32.totalorder %s18, 0
      %p38 = por %p36, %p37
      %p39 = scmp.ne.s32.totalorder %s28, %s31
      %p40 = scmp.eq.s32.totalorder %s23, 1
      %p41 = por %p39, %p40
      %p42 = scmp.ne.s32.totalorder %s31, %s32
      %p43 = scmp.eq.s32.totalorder %s23, 0
      %p44 = por %p42, %p43
      %p45 = scmp.ne.s32.totalorder %s31, %s32
      %p46 = scmp.eq.s32.totalorder %s24, 1
      %p47 = por %p45, %p46
      %p49 = scmp.ne.s32.totalorder %s32, %s48
      %p50 = scmp.eq.s32.totalorder %s24, 0
      %p51 = por %p49, %p50
      %s53 = sadd.s32 %s52, 1
      %p56 = scmp.eq.s32.totalorder %s18, 1
      %p57 = scmp.ne.s32.totalorder %s52, %s54
      %p58 = scmp.eq.s32.totalorder %s18, 0
      %p59 = por %p57, %p58
      %p60 = scmp.ne.s32.totalorder %s52, %s54
      %p61 = scmp.eq.s32.totalorder %s23, 1
      %p62 = por %p60, %p61
      %p63 = scmp.ne.s32.totalorder %s54, %s55
      %p64 = scmp.eq.s32.totalorder %s23, 0
      %p65 = por %p63, %p64
      %p66 = scmp.ne.s32.totalorder %s54, %s55
      %p67 = scmp.eq.s32.totalorder %s24, 1
      %p68 = por %p66, %p67
      %p70 = scmp.ne.s32.totalorder %s55, %s69
      %p71 = scmp.eq.s32.totalorder %s24, 0
      %p72 = por %p70, %p71
      %s74 = sadd.s32 %s73, 1
      %p77 = scmp.eq.s32.totalorder %s18, 1
      %p78 = scmp.ne.s32.totalorder %s73, %s75
      %p79 = scmp.eq.s32.totalorder %s18, 0
      %p80 = por %p78, %p79
      %p81 = scmp.ne.s32.totalorder %s73, %s75
      %p82 = scmp.eq.s32.totalorder %s23, 1
      %p83 = por %p81, %p82
      %p84 = scmp.ne.s32.totalorder %s75, %s76
      %p85 = scmp.eq.s32.totalorder %s23, 0
      %p86 = por %p84, %p85
      %p87 = scmp.ne.s32.totalorder %s75, %s76
      %p88 = scmp.eq.s32.totalorder %s24, 1
      %p89 = por %p87, %p88
      %p91 = scmp.ne.s32.totalorder %s76, %s90
      %p92 = scmp.eq.s32.totalorder %s24, 0
      %p93 = por %p91, %p92
      %s95 = sadd.s32 %s94, 1
      %p98 = scmp.eq.s32.totalorder %s18, 1
      %p99 = scmp.ne.s32.totalorder %s94, %s96
      %p100 = scmp.eq.s32.totalorder %s18, 0
      %p101 = por %p99, %p100
      %p102 = scmp.ne.s32.totalorder %s94, %s96
      %p103 = scmp.eq.s32.totalorder %s23, 1
      %p104 = por %p102, %p103
      %p105 = scmp.ne.s32.totalorder %s96, %s97
      %p106 = scmp.eq.s32.totalorder %s23, 0
      %p107 = por %p105, %p106
      %p108 = scmp.ne.s32.totalorder %s96, %s97
      %p109 = scmp.eq.s32.totalorder %s24, 1
      %p110 = por %p108, %p109
      %p112 = scmp.ne.s32.totalorder %s97, %s111
      %p113 = scmp.eq.s32.totalorder %s24, 0
      %p114 = por %p112, %p113
      %s116 = sadd.s32 %s115, 1
      %p119 = scmp.eq.s32.totalorder %s18, 1
      %p120 = scmp.ne.s32.totalorder %s115, %s117
      %p121 = scmp.eq.s32.totalorder %s18, 0
      %p122 = por %p120, %p121
      %p123 = scmp.ne.s32.totalorder %s115, %s117
      %p124 = scmp.eq.s32.totalorder %s23, 1
      %p125 = por %p123, %p124
      %p126 = scmp.ne.s32.totalorder %s117, %s118
      %p127 = scmp.eq.s32.totalorder %s23, 0
      %p128 = por %p126, %p127
      %p129 = scmp.ne.s32.totalorder %s117, %s118
      %p130 = scmp.eq.s32.totalorder %s24, 1
      %p131 = por %p129, %p130
      %p133 = scmp.ne.s32.totalorder %s118, %s132
      %p134 = scmp.eq.s32.totalorder %s24, 0
      %p135 = por %p133, %p134
      %s136 = ssub.s32 %s18, %s25
      %p137 = scmp.eq.s32.totalorder %s136, 0
      %s139 = sadd.s32 %s138, 1
      %s140 = scalar_select %p137, %s138, %s139
      %p143 = pneg %p137
      %p144 = scmp.eq.s32.totalorder %s18, 1
      %p145 = por %p143, %p144
      %p146 = scmp.ne.s32.totalorder %s138, %s141
      %p147 = scmp.eq.s32.totalorder %s18, 0
      %p148 = por %p146, %p147
      %p149 = scmp.ne.s32.totalorder %s138, %s141
      %p150 = scmp.eq.s32.totalorder %s23, 1
      %p151 = por %p149, %p150
      %p152 = scmp.ne.s32.totalorder %s141, %s142
      %p153 = scmp.eq.s32.totalorder %s23, 0
      %p154 = por %p152, %p153
      %p155 = scmp.ne.s32.totalorder %s141, %s142
      %p156 = scmp.eq.s32.totalorder %s24, 1
      %p157 = por %p155, %p156
      %p159 = scmp.ne.s32.totalorder %s142, %s158
      %p160 = scmp.eq.s32.totalorder %s24, 0
      %p161 = por %p159, %p160
      %p162 = scmp.le.s32.totalorder 1, %s18
      %p163 = scmp.lt.s32.totalorder %s18, 3
      %p164 = pnand %p162, %p163
      %p165 = pneg %p164
      // Predicated region
      $region9: #{tpu_custom_call.1} parent=5 // pred_check
        _
      $region10: #{tpu_custom_call.1} parent=5 // pred_check_branch
        %167 = sbr.rel (%p164) target = $region12
      $region11: #{tpu_custom_call.1} parent=5 // pred_region
        %s168 = ssub.s32 %s18, 1
        // Predicated region
        $region13: #{tpu_custom_call.1} parent=11 // pred_check
          %p169 = pneg %p65
        $region14: #{tpu_custom_call.1} parent=11 // pred_check_branch
          %171 = sbr.rel (%p169) target = $region16
        $region15: #{tpu_custom_call.1} parent=11 // pred_region
          _
        $region16: #{tpu_custom_call.1} parent=11 // pred_fallthru
          _
        // Predicated region
        $region17: #{tpu_custom_call.1} parent=11 // pred_check
          %p172 = pneg %p86
        $region18: #{tpu_custom_call.1} parent=11 // pred_check_branch
          %174 = sbr.rel (%p172) target = $region20
        $region19: #{tpu_custom_call.1} parent=11 // pred_region
          _
        $region20: #{tpu_custom_call.1} parent=11 // pred_fallthru
          _
        // Predicated region
        $region21: #{tpu_custom_call.1} parent=11 // pred_check
          %p175 = pneg %p107
        $region22: #{tpu_custom_call.1} parent=11 // pred_check_branch
          %177 = sbr.rel (%p175) target = $region24
        $region23: #{tpu_custom_call.1} parent=11 // pred_region
          %179 = vsyncadd [#allocation6], 0
          %s181 = sshll.u32 %s3, 4
          %s182 = int_to_ptr.hbm [resolvable:$true] %s181
          %s183 = sshll.u32 [#allocation5], 4
          %s184 = int_to_ptr.vmem [resolvable:$true] %s183
          %186 = dma.hbm_to_vmem [thread:$0]  %s182, 64, %s184, [#allocation6]
        $region24: #{tpu_custom_call.1} parent=11 // pred_fallthru
          _
        // Predicated region
        $region25: #{tpu_custom_call.1} parent=11 // pred_check
          %p187 = pneg %p128
        $region26: #{tpu_custom_call.1} parent=11 // pred_check_branch
          %189 = sbr.rel (%p187) target = $region28
        $region27: #{tpu_custom_call.1} parent=11 // pred_region
          _
        $region28: #{tpu_custom_call.1} parent=11 // pred_fallthru
          _
      $region12: #{tpu_custom_call.1} parent=5 // pred_fallthru
        _
      %p190 = scmp.lt.s32.totalorder %s18, 2
      // Predicated region
      $region29: #{tpu_custom_call.1} parent=5 // pred_check
        %p191 = pneg %p190
      $region30: #{tpu_custom_call.1} parent=5 // pred_check_branch
        %193 = sbr.rel (%p191) target = $region32
      $region31: #{tpu_custom_call.1} parent=5 // pred_region
        // Predicated region
        $region33: #{tpu_custom_call.1} parent=31 // pred_check
          %p194 = pneg %p38
        $region34: #{tpu_custom_call.1} parent=31 // pred_check_branch
          %196 = sbr.rel (%p194) target = $region36
        $region35: #{tpu_custom_call.1} parent=31 // pred_region
          %s197 = sand.u32 %s28, 1
          %s198 = scalar_lea.sflag [#allocation3], %s197
          %s199 = sand.u32 %s28, 1
          %s200 = smul.addr %s199, 8
          %s201 = scalar_lea.vmem [#allocation2], %s200
          %203 = vsyncadd %s198, 0
          %s204 = smul.addr %s18, 2
          %s205 = smul.addr %s204, 4
          %s206 = scalar_lea.hbm %s0, %s205
          %s208 = sshll.u32 %s206, 4
          %s209 = int_to_ptr.hbm [resolvable:$true] %s208
          %s210 = sshll.u32 %s201, 4
          %s211 = int_to_ptr.vmem [resolvable:$true] %s210
          %213 = dma.hbm_to_vmem [thread:$0]  %s209, 128, %s211, %s198
        $region36: #{tpu_custom_call.1} parent=31 // pred_fallthru
          _
      $region32: #{tpu_custom_call.1} parent=5 // pred_fallthru
        _
      %p214 = scmp.le.s32.totalorder 1, %s18
      %p215 = scmp.lt.s32.totalorder %s18, 3
      %p216 = pnand %p214, %p215
      %p217 = pneg %p216
      // Predicated region
      $region37: #{tpu_custom_call.1} parent=5 // pred_check
        _
      $region38: #{tpu_custom_call.1} parent=5 // pred_check_branch
        %219 = sbr.rel (%p216) target = $region40
      $region39: #{tpu_custom_call.1} parent=5 // pred_region
        %s220 = ssub.s32 %s18, 1
        %s221 = sand.u32 %s31, 1
        %s222 = scalar_lea.sflag [#allocation3], %s221
        %s223 = sand.u32 %s31, 1
        %s224 = smul.addr %s223, 8
        %s225 = scalar_lea.vmem [#allocation2], %s224
        // Predicated region
        $region41: #{tpu_custom_call.1} parent=39 // pred_check
          %p226 = pneg %p44
        $region42: #{tpu_custom_call.1} parent=39 // pred_check_branch
          %228 = sbr.rel (%p226) target = $region44
        $region43: #{tpu_custom_call.1} parent=39 // pred_region
          %230 = dma.done %s222, 128
        $region44: #{tpu_custom_call.1} parent=39 // pred_fallthru
          _
        // Predicated region
        $region45: #{tpu_custom_call.1} parent=39 // pred_check
          %p231 = pneg %p107
        $region46: #{tpu_custom_call.1} parent=39 // pred_check_branch
          %233 = sbr.rel (%p231) target = $region48
        $region47: #{tpu_custom_call.1} parent=39 // pred_region
          %235 = dma.done [#allocation6], 64
        $region48: #{tpu_custom_call.1} parent=39 // pred_fallthru
          _
        %s236 = sand.u32 %s31, 1
        %s237 = scalar_lea.sflag [#allocation3], %s236
        %s238 = sand.u32 %s31, 1
        %s239 = smul.addr %s238, 8
        %s240 = scalar_lea.vmem [#allocation2], %s239
        %p241 = pneg %p44
        %p242 = pneg %p41
        %p243 = pneg %p65
        %p244 = pneg %p62
        %p245 = pneg %p86
        %p246 = pneg %p83
        %p247 = pneg %p107
        %p248 = pneg %p104
        %p249 = pneg %p128
        %p250 = pneg %p125
        %p251 = pneg %p154
        %p252 = pneg %p151
        %s253 = sand.u32 %s141, 1
        %s254 = scalar_lea.sflag [#allocation4], %s253
        %s255 = sand.u32 %s141, 1
        %s256 = smul.addr %s255, 8
        %s257 = scalar_lea.vmem [#allocation7], %s256
        %v258 = vld [vmem:[%s225] sm:$0xff]
        %260 = vst [vmem:[#allocation1] ss:$2 sm:$0xff] %v258
        %v261 = vld.sshfl [vmem:[#allocation1] sm:$0xff pattern:$0x75316420]
        %v262 = vld.sshfl [vmem:[#allocation1 + $0x8] sm:$0xff pattern:$0x75316420]
        %vm265 = vcmask 1043456
        %v266 = vsel %vm265, %v261, 0.0
        %v267 = vsel %vm265, %v262, 0.0
        %v268 = vadd.f32 %v266, %v267
        %269 = vadd.xlane.f32.xlu0 %v268
        %v270 = vpop.xlane.xlu0 %269
        %v271 = vrcp.pop 256.0
        %v272 = vmul.f32 256.0, %v271
        %v273 = vsub.f32 1.0, %v272
        %v274 = vmul.f32 %v271, %v273
        %v275 = vadd.f32 %v271, %v274
        %vm276 = vweird.f32 %v271
        %v277 = vsel %vm276, %v271, %v275
        %v278 = vmul.f32 %v270, %v277
        %v279 = vld [vmem:[%s1] sm:$0xf]
        %v280 = vmul.f32 %v279, %v278
        %vm281 = vcmask 60416
        %v282 = vsel %vm281, %v280, 0.0
        %v283 = vrot.slane %v282, 4
        %v284 = vadd.f32 %v282, %v283
        %v285 = vrot.slane %v284, 2
        %v286 = vadd.f32 %v284, %v285
        %v287 = vrot.slane %v286, 1
        %v288 = vadd.f32 %v286, %v287
        %v289 = vld [vmem:[%s2] sm:$0x1]
        %v290 = vadd.f32 %v288, %v289
        %v291 = vmax.f32 %v290, 0.0
        %v292 = vmin.f32 %v291, 6.0
        %v293 = vld [vmem:[#allocation5] sm:$0xf]
        %v294 = vperm.slane %v292, 0
        %v295 = vmul.f32 %v293, %v294
        %v296 = vsel %vm281, %v295, 0.0
        %297 = vadd.xlane.f32.xlu0 %v296
        %v298 = vpop.xlane.xlu0 %297
        %v299 = vld [vmem:[%s4] sm:$0xf]
        %v300 = vadd.f32 %v298, %v299
        %v301 = vadd.f32 %v300, 3.0
        %v302 = vmax.f32 %v301, 0.0
        %v303 = vmin.f32 %v302, 6.0
        %v304 = vmul.f32 %v303, 0.16666667
        %306 = vset.pattern.permute.xlu0 0
        %307 = vperm.xlu0 %306, %v304
        %v308 = vpop.permute.xlu0 %307
        %v310 = vunpack.c.l.s4 839922192
        %v311 = vunpack.c.0.s8 %v310
        %v312 = vperm.slane %v308, %v311
        %v314 = vmul.f32 %v258, %v312
        %315 = vst [vmem:[%s257] sm:$0xff] %v314
        %s316 = sand.u32 %s141, 1
        %s317 = scalar_lea.sflag [#allocation4], %s316
        %s318 = sand.u32 %s141, 1
        %s319 = smul.addr %s318, 8
        %s320 = scalar_lea.vmem [#allocation7], %s319
        // Predicated region
        $region49: #{tpu_custom_call.1} parent=39 // pred_check
          %p321 = pneg %p151
        $region50: #{tpu_custom_call.1} parent=39 // pred_check_branch
          %323 = sbr.rel (%p321) target = $region52
        $region51: #{tpu_custom_call.1} parent=39 // pred_region
          %325 = vsyncadd %s317, 0
          %s326 = smul.addr %s23, 2
          %s327 = smul.addr %s326, 4
          %s328 = scalar_lea.hbm %s5, %s327
          %s330 = sshll.u32 %s320, 4
          %s331 = int_to_ptr.vmem [resolvable:$true] %s330
          %s332 = sshll.u32 %s328, 4
          %s333 = int_to_ptr.hbm [resolvable:$true] %s332
          %335 = dma.vmem_to_hbm [thread:$0]  %s331, 128, %s333, %s317
        $region52: #{tpu_custom_call.1} parent=39 // pred_fallthru
          _
      $region40: #{tpu_custom_call.1} parent=5 // pred_fallthru
        _
      %p336 = scmp.le.s32.totalorder 2, %s18
      // Predicated region
      $region53: #{tpu_custom_call.1} parent=5 // pred_check
        %p337 = pneg %p336
      $region54: #{tpu_custom_call.1} parent=5 // pred_check_branch
        %339 = sbr.rel (%p337) target = $region56
      $region55: #{tpu_custom_call.1} parent=5 // pred_region
        %s340 = ssub.s32 %s18, 2
        // Predicated region
        $region57: #{tpu_custom_call.1} parent=55 // pred_check
          %p341 = pneg %p157
        $region58: #{tpu_custom_call.1} parent=55 // pred_check_branch
          %343 = sbr.rel (%p341) target = $region60
        $region59: #{tpu_custom_call.1} parent=55 // pred_region
          %s344 = sand.u32 %s142, 1
          %s345 = scalar_lea.sflag [#allocation4], %s344
          %s346 = sand.u32 %s142, 1
          %s347 = smul.addr %s346, 8
          %s348 = scalar_lea.vmem [#allocation7], %s347
          %350 = dma.done %s345, 128
        $region60: #{tpu_custom_call.1} parent=55 // pred_fallthru
          _
      $region56: #{tpu_custom_call.1} parent=5 // pred_fallthru
        _
    $region6: #{tpu_custom_call.1} parent=1 // loop_footer
      %s22 = sadd.s32 1, %s18
    $region7: #{tpu_custom_call.1} parent=1 // loop_footer_branch
      %17 = sbr.rel target = $region3
    $region8: #{tpu_custom_call.1} parent=1 // loop_exit
      _
    %351 = vsyncpa [#allocation3], 1
    %s352 = scalar_lea.sflag [#allocation3], 1
    %353 = vsyncpa %s352, 1
    %354 = vsyncpa [#allocation6], 1
    %355 = vsyncpa [#allocation4], 1
    %s356 = scalar_lea.sflag [#allocation4], 1
    %357 = vsyncpa %s356, 1

</llo_original>
